<compile_context>
chip_gen: v5e
topology: v5e:2x2
jax: 0.10.0
libtpu: 0.0.40
codegen_flags: <defaults>
</compile_context>

<pallas_src>
import jax
import jax.numpy as jnp
from jax.experimental import pallas as pl
from jax.experimental.pallas import tpu as pltpu


def _glu_math(x0, x1, out_dtype):
    # Upcast to f32 for the transcendentals (no-op for f32 inputs).
    x0 = x0.astype(jnp.float32)
    x1 = x1.astype(jnp.float32)
    act = jnp.tanh(x0)
    # sigmoid(x) == 0.5 * (tanh(0.5 * x) + 1)  -> 2 EUP ops total per output.
    gate = 0.5 * (jnp.tanh(0.5 * x1) + 1.0)
    return (act * gate).astype(out_dtype)


def _glu_kernel_split(x0_ref, x1_ref, o_ref):
    # Both halves arrive as separate lane-dense (tile_rows, c_half) blocks.
    o_ref[...] = _glu_math(x0_ref[...], x1_ref[...], o_ref.dtype)


def _glu_kernel_fused(x_ref, o_ref):
    # Fallback for c_half not a multiple of 128: slice the full-width tile.
    c_half = o_ref.shape[-1]
    o_ref[...] = _glu_math(x_ref[:, :c_half], x_ref[:, c_half:], o_ref.dtype)


def _round_up(a: int, b: int) -> int:
    return ((a + b - 1) // b) * b


def gated_linear_unit(x: jax.Array, *, tile_rows: int | None = None) -> jax.Array:
    """GLU over the last (channel) axis: tanh(x[..., :C/2]) * sigmoid(x[..., C/2:])."""
    orig_shape = x.shape
    C = orig_shape[-1]
    assert C % 2 == 0, "channel dim must be even for chunk(2)"
    c_half = C // 2

    # Flatten leading dims into rows (cheap reshape, no transpose).
    rows = 1
    for d in orig_shape[:-1]:
        rows *= d
    x2d = x.reshape(rows, C)

    itemsize = jnp.dtype(x.dtype).itemsize
    # Sublane packing: f32 -> 8 rows/vreg, bf16 -> 16, int8/fp8 -> 32.
    sub = {4: 8, 2: 16, 1: 32}.get(itemsize, 8)

    if tile_rows is None:
        # Target ~1024 rows per step (>=85% of HBM roofline in measured sweeps),
        # capped so (2 inputs + 1 output blocks) * double-buffering stays well
        # under v7x's default scoped VMEM limit.
        vmem_budget_bytes = 8 * 1024 * 1024
        per_row_bytes = 3 * C * itemsize  # (x0 + x1 + out) * 2 buffers = 3*C*itemsize
        cap = max(sub, vmem_budget_bytes // per_row_bytes)
        tile_rows = min(1024, cap)

    # Keep the tile a multiple of the sublane packing and no larger than needed.
    tile_rows = min(tile_rows, _round_up(rows, sub))
    tile_rows = max(sub, (tile_rows // sub) * sub)

    grid = (pl.cdiv(rows, tile_rows),)
    out_shape = jax.ShapeDtypeStruct((rows, c_half), x.dtype)
    cparams = pltpu.CompilerParams(dimension_semantics=("parallel",))

    if c_half % 128 == 0:
        # Lane-aligned halves: feed x2d twice with two lane-dense block views.
        out2d = pl.pallas_call(
            _glu_kernel_split,
            out_shape=out_shape,
            grid_spec=pltpu.PrefetchScalarGridSpec(
                num_scalar_prefetch=0,
                grid=grid,
                in_specs=[
                    pl.BlockSpec((tile_rows, c_half), lambda i: (i, 0)),
                    pl.BlockSpec((tile_rows, c_half), lambda i: (i, 1)),
                ],
                out_specs=pl.BlockSpec((tile_rows, c_half), lambda i: (i, 0)),
            ),
            compiler_params=cparams,
        )(x2d, x2d)
    else:
        # General channel widths: full-width tile, split inside the kernel.
        out2d = pl.pallas_call(
            _glu_kernel_fused,
            out_shape=out_shape,
            grid_spec=pltpu.PrefetchScalarGridSpec(
                num_scalar_prefetch=0,
                grid=grid,
                in_specs=[pl.BlockSpec((tile_rows, C), lambda i: (i, 0))],
                out_specs=pl.BlockSpec((tile_rows, c_half), lambda i: (i, 0)),
            ),
            compiler_params=cparams,
        )(x2d)

    return out2d.reshape(*orig_shape[:-1], c_half)


def _reference(x):
    x0, x1 = jnp.split(x, 2, axis=-1)
    return jnp.tanh(x0) * jax.nn.sigmoid(x1)


if __name__ == "__main__":
    key = jax.random.PRNGKey(0)

    # Main case consistent with the module: batch=2, seq=8, channels=256 (channel-last).
    B, T, C = 2, 8, 256
    x = jax.random.normal(key, (B, T, C), dtype=jnp.float32)
    out = jax.block_until_ready(gated_linear_unit(x))
    ref = _reference(x)
    assert out.shape == (B, T, C // 2)
    assert jnp.allclose(out, ref, atol=2e-6, rtol=1e-5)

    # Partial final block (rows not a multiple of the sublane tile).
    k1, k2 = jax.random.split(key)
    x_odd = jax.random.normal(k1, (3, 5, 256), dtype=jnp.float32)
    out_odd = jax.block_until_ready(gated_linear_unit(x_odd))
    assert out_odd.shape == (3, 5, 128)
    assert jnp.allclose(out_odd, _reference(x_odd), atol=2e-6, rtol=1e-5)

    # Non-lane-aligned half (fallback path) and bf16 input (f32 transcendentals).
    x_small = jax.random.normal(k2, (2, 8, 64), dtype=jnp.bfloat16)
    out_small = jax.block_until_ready(gated_linear_unit(x_small))
    assert out_small.shape == (2, 8, 32)
    assert jnp.allclose(
        out_small.astype(jnp.float32),
        _reference(x_small.astype(jnp.float32)),
        atol=2e-2,
        rtol=2e-2,
    )

    print("KERNEL_OK")
</pallas_src>

<mosaic_0001>
module attributes {stable_mosaic.version = 11 : i64} {
  func.func @_glu_kernel_split(%arg0: i32, %arg1: memref<16x128xf32, #tpu.memory_space<vmem>>, %arg2: memref<16x128xf32, #tpu.memory_space<vmem>>, %arg3: memref<16x128xf32, #tpu.memory_space<vmem>>) attributes {dimension_semantics = [#tpu.dimension_semantics<parallel>], iteration_bounds = array<i64: 1>, scalar_prefetch = 0 : i64, scratch_operands = 0 : i64, tpu.core_type = #tpu.core_type<tc>, window_params = [{transform_indices = @transform_0, window_bounds = array<i64: 16, 128>}, {transform_indices = @transform_1, window_bounds = array<i64: 16, 128>}, {transform_indices = @transform_2, window_bounds = array<i64: 16, 128>}]} {
    %c0 = arith.constant 0 : index
    %c0_0 = arith.constant 0 : index
    %0 = vector.load %arg1[%c0, %c0_0] : memref<16x128xf32, #tpu.memory_space<vmem>>, vector<16x128xf32>
    %c0_1 = arith.constant 0 : index
    %c0_2 = arith.constant 0 : index
    %1 = vector.load %arg2[%c0_1, %c0_2] : memref<16x128xf32, #tpu.memory_space<vmem>>, vector<16x128xf32>
    %2 = math.tanh %0 : vector<16x128xf32>
    %cst = arith.constant 5.000000e-01 : f32
    %3 = vector.broadcast %cst : f32 to vector<16x128xf32>
    %4 = arith.mulf %3, %1 : vector<16x128xf32>
    %5 = math.tanh %4 : vector<16x128xf32>
    %cst_3 = arith.constant 1.000000e+00 : f32
    %6 = vector.broadcast %cst_3 : f32 to vector<16x128xf32>
    %7 = arith.addf %5, %6 : vector<16x128xf32>
    %cst_4 = arith.constant 5.000000e-01 : f32
    %8 = vector.broadcast %cst_4 : f32 to vector<16x128xf32>
    %9 = arith.mulf %8, %7 : vector<16x128xf32>
    %10 = arith.mulf %2, %9 : vector<16x128xf32>
    %c0_5 = arith.constant 0 : index
    %c0_6 = arith.constant 0 : index
    %11 = vector.load %arg3[%c0_5, %c0_6] : memref<16x128xf32, #tpu.memory_space<vmem>>, vector<16x128xf32>
    tpu.vector_store %arg3[%c0_5, %c0_6], %10 {strides = array<i32>} : memref<16x128xf32, #tpu.memory_space<vmem>>, vector<16x128xf32>,
    return
  }
  func.func @transform_0(%arg0: i32) -> (i32, i32) {
    %c0_i32 = arith.constant 0 : i32
    %c0_i32_0 = arith.constant 0 : i32
    return %arg0, %c0_i32 : i32, i32
  }
  func.func @transform_1(%arg0: i32) -> (i32, i32) {
    %c1_i32 = arith.constant 1 : i32
    %c0_i32 = arith.constant 0 : i32
    return %arg0, %c1_i32 : i32, i32
  }
  func.func @transform_2(%arg0: i32) -> (i32, i32) {
    %c0_i32 = arith.constant 0 : i32
    %c0_i32_0 = arith.constant 0 : i32
    return %arg0, %c0_i32 : i32, i32
  }
}

</mosaic_0001>

<llo_original>
// kernel: tpu_custom_call.1
$region0: #{tpu_custom_call.1}
  #allocation0 [shape = 'u32[]', space=smem, size = 0x4, offset = 0x4, fixed_abs, tag = 'smem constant byte address 0x4 - core index']
  #allocation1 [shape = 'u32[72,128]{1,0:T(1,128)}', space=vmem, size = 0x9000, scoped, tag = 'internal scratch']
  %s0 = inlined_call_operand.hbm [shape: f32[16,256], index: 0, kind: input, shape index: {}]
  %s1 = inlined_call_operand.hbm [shape: f32[16,256], index: 1, kind: input, shape index: {}]
  %s2 = inlined_call_operand.hbm [shape: f32[16,128], index: 2, kind: output, shape index: {}]
  %s3 = sld [smem:[#allocation0]]
  $region26: #{tpu_custom_call.1} parent=0
    _
  %s5 = ssub.s32 1, %s3
  %s6 = scalar_select 0, %s5, %s3
  $region1: #{tpu_custom_call.1} parent=0
    #allocation2 [shape = 'u8[8192]{0}', space=vmem, size = 0x2000, scoped, tag = 'input window, operand 0, single buffered']
    #allocation3 [shape = 's32[1]{0}', space=sflag, size = 0x4, scoped, tag = 'scoped memory for tpu_custom_call.1']
    #allocation4 [shape = 's32[1]{0}', space=sflag, size = 0x4, scoped, tag = 'scoped memory for tpu_custom_call.1']
    #allocation5 [shape = 'u8[8192]{0}', space=vmem, size = 0x2000, scoped, tag = 'input window, operand 1, single buffered']
    #allocation6 [shape = 's32[1]{0}', space=sflag, size = 0x4, scoped, tag = 'scoped memory for tpu_custom_call.1']
    #allocation7 [shape = 'u8[8192]{0}', space=vmem, size = 0x2000, scoped, tag = 'output window, operand 0, single buffered']
    %7 = vsyncpa [#allocation3], 0
    %8 = vsyncpa [#allocation6], 0
    %9 = vsyncpa [#allocation4], 0
    // Predicated region
    $region2: #{tpu_custom_call.1} parent=1 // pred_check
      _
    $region3: #{tpu_custom_call.1} parent=1 // pred_check_branch
      %11 = sbr.rel (0) target = $region5
    $region4: #{tpu_custom_call.1} parent=1 // pred_region
      %13 = vsyncadd [#allocation3], 0
      %s14 = sshll.u32 %s0, 4
      %s15 = int_to_ptr.hbm [resolvable:$true] %s14
      %s16 = sshll.u32 [#allocation2], 4
      %s17 = int_to_ptr.vmem [resolvable:$true] %s16
      %22 = dma.hbm_to_vmem [thread:$0]  %s15, 256, %s17, [#allocation3], 256, 128, 8
    $region5: #{tpu_custom_call.1} parent=1 // pred_fallthru
      _
    // Predicated region
    $region6: #{tpu_custom_call.1} parent=1 // pred_check
      _
    $region7: #{tpu_custom_call.1} parent=1 // pred_check_branch
      %24 = sbr.rel (0) target = $region9
    $region8: #{tpu_custom_call.1} parent=1 // pred_region
      %26 = vsyncadd [#allocation6], 0
      %s27 = scalar_lea.hbm %s1, 8
      %s28 = sshll.u32 %s27, 4
      %s29 = int_to_ptr.hbm [resolvable:$true] %s28
      %s30 = sshll.u32 [#allocation5], 4
      %s31 = int_to_ptr.vmem [resolvable:$true] %s30
      %36 = dma.hbm_to_vmem [thread:$0]  %s29, 256, %s31, [#allocation6], 256, 128, 8
    $region9: #{tpu_custom_call.1} parent=1 // pred_fallthru
      _
    // Predicated region
    $region10: #{tpu_custom_call.1} parent=1 // pred_check
      _
    $region11: #{tpu_custom_call.1} parent=1 // pred_check_branch
      %38 = sbr.rel (0) target = $region13
    $region12: #{tpu_custom_call.1} parent=1 // pred_region
      %40 = dma.done [#allocation3], 256
    $region13: #{tpu_custom_call.1} parent=1 // pred_fallthru
      _
    // Predicated region
    $region14: #{tpu_custom_call.1} parent=1 // pred_check
      _
    $region15: #{tpu_custom_call.1} parent=1 // pred_check_branch
      %42 = sbr.rel (0) target = $region17
    $region16: #{tpu_custom_call.1} parent=1 // pred_region
      %44 = dma.done [#allocation6], 256
    $region17: #{tpu_custom_call.1} parent=1 // pred_fallthru
      _
    %v45 = vld [vmem:[#allocation2] sm:$0xff]
    %v46 = vld [vmem:[#allocation2 + $0x8] sm:$0xff]
    %v47 = vld [vmem:[#allocation5] sm:$0xff]
    %v48 = vld [vmem:[#allocation5 + $0x8] sm:$0xff]
    %v49 = vtanh.pop %v45
    %v50 = vtanh.pop %v46
    %v51 = vmul.f32 %v47, 0.5
    %v52 = vmul.f32 %v48, 0.5
    %v53 = vtanh.pop %v51
    %v54 = vtanh.pop %v52
    %v55 = vadd.f32 %v53, 1.0
    %v56 = vadd.f32 %v54, 1.0
    %v57 = vmul.f32 %v55, 0.5
    %v58 = vmul.f32 %v56, 0.5
    %v59 = vmul.f32 %v49, %v57
    %v60 = vmul.f32 %v50, %v58
    %61 = vst [vmem:[#allocation7] sm:$0xff] %v59
    %62 = vst [vmem:[#allocation7 + $0x8] sm:$0xff] %v60
    // Predicated region
    $region18: #{tpu_custom_call.1} parent=1 // pred_check
      _
    $region19: #{tpu_custom_call.1} parent=1 // pred_check_branch
      %64 = sbr.rel (0) target = $region21
    $region20: #{tpu_custom_call.1} parent=1 // pred_region
      %66 = vsyncadd [#allocation4], 0
      %s67 = sshll.u32 [#allocation7], 4
      %s68 = int_to_ptr.vmem [resolvable:$true] %s67
      %s69 = sshll.u32 %s2, 4
      %s70 = int_to_ptr.hbm [resolvable:$true] %s69
      %75 = dma.vmem_to_hbm [thread:$0]  %s68, 256, %s70, [#allocation4], 128, 128, 8
    $region21: #{tpu_custom_call.1} parent=1 // pred_fallthru
      _
    // Predicated region
    $region22: #{tpu_custom_call.1} parent=1 // pred_check
      _
    $region23: #{tpu_custom_call.1} parent=1 // pred_check_branch
      %77 = sbr.rel (0) target = $region25
    $region24: #{tpu_custom_call.1} parent=1 // pred_region
      %79 = dma.done [#allocation4], 256
    $region25: #{tpu_custom_call.1} parent=1 // pred_fallthru
      _
    %80 = vsyncpa [#allocation3], 1
    %81 = vsyncpa [#allocation6], 1
    %82 = vsyncpa [#allocation4], 1

</llo_original>
